<compile_context>
chip_gen: v5e
topology: v5e:2x2
jax: 0.10.0
libtpu: 0.0.40
codegen_flags: <defaults>
</compile_context>

<pallas_src>
import functools

import jax
import jax.numpy as jnp
from jax import lax
from jax.experimental import pallas as pl
from jax.experimental.pallas import tpu as pltpu


def _build_im2col(src, stack_ref, pos, col, *, H, W, C):
    """Fill stack_ref (9*C, H*W) with the im2col rows for a 3x3 / pad=1 conv.

    src : (C, H*W) f32 value, spatial flattened row-major.
    pos : (1, H*W) int32 lane iota (p = y*W + x).
    col : (1, H*W) int32, x = p % W (precomputed in the wrapper).
    Tap (dy, dx) needs src[:, p + (dy-1)*W + (dx-1)] with zero padding; the shift
    is a lane rotation (pltpu.roll) and out-of-image taps are masked to zero.
    """
    HW = H * W
    for dy in range(3):
        for dx in range(3):
            oy, ox = dy - 1, dx - 1
            t = dy * 3 + dx
            off = oy * W + ox
            if off == 0:
                shifted = src
            else:
                shifted = pltpu.roll(src, (-off) % HW, axis=1)
            conds = []
            if oy == -1:
                conds.append(pos >= W)                # y >= 1
            elif oy == 1:
                conds.append(pos < (H - 1) * W)       # y <= H-2
            if ox == -1:
                conds.append(col >= 1)                # x >= 1
            elif ox == 1:
                conds.append(col <= W - 2)            # x <= W-2
            if conds:
                mask = conds[0]
                for c in conds[1:]:
                    mask = jnp.logical_and(mask, c)
                shifted = jnp.where(mask, shifted, 0.0)
            stack_ref[t * C:(t + 1) * C, :] = shifted


def _resblock_kernel(x_ref, w1_ref, w2_ref, col_ref, o_ref, stack_ref, *, H, W, C):
    """One batch element per grid step.

    x_ref  : (1, C, H*W)  input (also the residual branch)
    w1_ref : (C, 9*C)     conv1 weights, K ordered as (dy, dx, Cin)
    w2_ref : (C, 9*C)     conv2 weights
    col_ref: (1, H*W)     int32 x-coordinate per lane (loaded once)
    o_ref  : (1, C, H*W)
    stack  : VMEM scratch (9*C, H*W) im2col buffer, reused by both convs
    """
    HW = H * W
    x = x_ref[0]                                         # (C, HW) f32
    pos = lax.broadcasted_iota(jnp.int32, (1, HW), 1)
    col = col_ref[...]

    # conv1 (3x3, pad=1, no bias) as a single MXU dot, then ReLU.
    _build_im2col(x, stack_ref, pos, col, H=H, W=W, C=C)
    h = jnp.dot(w1_ref[...], stack_ref[...],
                preferred_element_type=jnp.float32)
    h = jnp.maximum(h, 0.0)

    # conv2 (3x3, pad=1, no bias) + residual.
    _build_im2col(h, stack_ref, pos, col, H=H, W=W, C=C)
    y = jnp.dot(w2_ref[...], stack_ref[...],
                preferred_element_type=jnp.float32)
    o_ref[0] = (y + x).astype(o_ref.dtype)


@jax.jit
def residual_block(x_nchw, w1_oihw, w2_oihw):
    """x: (N, C, H, W) float32; weights: (Cout, Cin, 3, 3) float32 (PyTorch)."""
    N, C, H, W = x_nchw.shape
    HW = H * W
    x_flat = x_nchw.reshape(N, C, HW)                    # metadata-only reshape

    # (Cout, Cin, 3, 3) -> (Cout, 3, 3, Cin) -> (Cout, 9*Cin); K index is
    # (dy*3 + dx)*Cin + ci, matching the im2col stack row order.
    w1 = jnp.transpose(w1_oihw, (0, 2, 3, 1)).reshape(C, 9 * C)
    w2 = jnp.transpose(w2_oihw, (0, 2, 3, 1)).reshape(C, 9 * C)
    col_idx = jnp.tile(jnp.arange(W, dtype=jnp.int32), H)[None, :]   # (1, HW)

    kernel = functools.partial(_resblock_kernel, H=H, W=W, C=C)
    # TODO(synk): for large images (im2col scratch is 36*C*H*W bytes) tile the
    # spatial axis into H-strips with a 1-row halo and fuse batch elements so the
    # parallel grid has >2 points (v7x, 64 MiB VMEM); whole-image-per-step below
    # targets the small DPIR tiles used here.
    out_flat = pl.pallas_call(
        kernel,
        out_shape=jax.ShapeDtypeStruct((N, C, HW), x_nchw.dtype),
        grid_spec=pltpu.PrefetchScalarGridSpec(
            num_scalar_prefetch=0,
            grid=(N,),
            in_specs=[
                pl.BlockSpec((1, C, HW), lambda n: (n, 0, 0)),
                pl.BlockSpec((C, 9 * C), lambda n: (0, 0)),   # constant -> fetched once
                pl.BlockSpec((C, 9 * C), lambda n: (0, 0)),   # constant -> fetched once
                pl.BlockSpec((1, HW), lambda n: (0, 0)),      # constant -> fetched once
            ],
            out_specs=pl.BlockSpec((1, C, HW), lambda n: (n, 0, 0)),
            scratch_shapes=[pltpu.VMEM((9 * C, HW), jnp.float32)],
        ),
        compiler_params=pltpu.CompilerParams(
            dimension_semantics=("parallel",)),
    )(x_flat, w1, w2, col_idx)
    return out_flat.reshape(N, C, H, W)                  # metadata-only reshape


def _reference(x, w1, w2):
    dn = ("NCHW", "OIHW", "NCHW")
    h = lax.conv_general_dilated(x, w1, (1, 1), [(1, 1), (1, 1)],
                                 dimension_numbers=dn)
    h = jnp.maximum(h, 0.0)
    h = lax.conv_general_dilated(h, w2, (1, 1), [(1, 1), (1, 1)],
                                 dimension_numbers=dn)
    return h + x


if __name__ == "__main__":
    N, C, H, W = 2, 4, 16, 16
    key = jax.random.PRNGKey(0)
    kx, k1, k2 = jax.random.split(key, 3)

    x = jax.random.normal(kx, (N, C, H, W), dtype=jnp.float32)
    # deterministic synthetic weights, PyTorch Conv2d layout (Cout, Cin, kh, kw)
    w1 = 0.1 * jax.random.normal(k1, (C, C, 3, 3), dtype=jnp.float32)
    w2 = 0.1 * jax.random.normal(k2, (C, C, 3, 3), dtype=jnp.float32)

    out = jax.block_until_ready(residual_block(x, w1, w2))
    ref = jax.block_until_ready(_reference(x, w1, w2))

    assert out.shape == (N, C, H, W)
    assert jnp.allclose(out, ref, atol=1e-4, rtol=1e-4), "mismatch vs reference"
    print("KERNEL_OK")
</pallas_src>

<mosaic_0001>
module attributes {stable_mosaic.version = 11 : i64} {
  func.func @_resblock_kernel(%arg0: i32, %arg1: memref<1x4x256xf32, #tpu.memory_space<vmem>>, %arg2: memref<4x36xf32, #tpu.memory_space<vmem>>, %arg3: memref<4x36xf32, #tpu.memory_space<vmem>>, %arg4: memref<1x256xi32, #tpu.memory_space<vmem>>, %arg5: memref<1x4x256xf32, #tpu.memory_space<vmem>>, %arg6: memref<36x256xf32, #tpu.memory_space<vmem>>) attributes {dimension_semantics = [#tpu.dimension_semantics<parallel>], iteration_bounds = array<i64: 2>, scalar_prefetch = 0 : i64, scratch_operands = 1 : i64, tpu.core_type = #tpu.core_type<tc>, window_params = [{transform_indices = @transform_0, window_bounds = array<i64: 1, 4, 256>}, {pipeline_mode = #tpu.pipeline_mode<synchronous>, transform_indices = @transform_1, window_bounds = array<i64: 4, 36>}, {pipeline_mode = #tpu.pipeline_mode<synchronous>, transform_indices = @transform_2, window_bounds = array<i64: 4, 36>}, {pipeline_mode = #tpu.pipeline_mode<synchronous>, transform_indices = @transform_3, window_bounds = array<i64: 1, 256>}, {transform_indices = @transform_4, window_bounds = array<i64: 1, 4, 256>}]} {
    %c0 = arith.constant 0 : index
    %c0_0 = arith.constant 0 : index
    %c0_1 = arith.constant 0 : index
    %0 = vector.load %arg1[%c0, %c0_0, %c0_1] : memref<1x4x256xf32, #tpu.memory_space<vmem>>, vector<1x4x256xf32>
    %1 = vector.shape_cast %0 : vector<1x4x256xf32> to vector<4x256xf32>
    %2 = tpu.iota {dimensions = array<i32: 1>} : vector<1x256xi32>
    %c0_2 = arith.constant 0 : index
    %c0_3 = arith.constant 0 : index
    %3 = vector.load %arg4[%c0_2, %c0_3] : memref<1x256xi32, #tpu.memory_space<vmem>>, vector<1x256xi32>
    %c17_i32 = arith.constant 17 : i32
    %4 = tpu.dynamic_rotate %1 by %c17_i32 dim 1 : vector<4x256xf32>, i32 -> vector<4x256xf32>
    %c16_i32 = arith.constant 16 : i32
    %5 = vector.broadcast %c16_i32 : i32 to vector<1x256xi32>
    %6 = arith.cmpi sge, %2, %5 : vector<1x256xi32>
    %c1_i32 = arith.constant 1 : i32
    %7 = vector.broadcast %c1_i32 : i32 to vector<1x256xi32>
    %8 = arith.cmpi sge, %3, %7 : vector<1x256xi32>
    %9 = arith.andi %6, %8 : vector<1x256xi1>
    %cst = arith.constant 0.000000e+00 : f32
    %10 = vector.shape_cast %9 : vector<1x256xi1> to vector<1x256xi1>
    %11 = vector.broadcast %10 : vector<1x256xi1> to vector<4x256xi1>
    %12 = vector.broadcast %cst : f32 to vector<4x256xf32>
    %13 = arith.select %11, %4, %12 : vector<4x256xi1>, vector<4x256xf32>
    %c0_4 = arith.constant 0 : index
    %c0_5 = arith.constant 0 : index
    %14 = vector.load %arg6[%c0_4, %c0_5] : memref<36x256xf32, #tpu.memory_space<vmem>>, vector<4x256xf32>
    tpu.vector_store %arg6[%c0_4, %c0_5], %13 {strides = array<i32>} : memref<36x256xf32, #tpu.memory_space<vmem>>, vector<4x256xf32>,
    %c16_i32_6 = arith.constant 16 : i32
    %15 = tpu.dynamic_rotate %1 by %c16_i32_6 dim 1 : vector<4x256xf32>, i32 -> vector<4x256xf32>
    %c16_i32_7 = arith.constant 16 : i32
    %16 = vector.broadcast %c16_i32_7 : i32 to vector<1x256xi32>
    %17 = arith.cmpi sge, %2, %16 : vector<1x256xi32>
    %cst_8 = arith.constant 0.000000e+00 : f32
    %18 = vector.shape_cast %17 : vector<1x256xi1> to vector<1x256xi1>
    %19 = vector.broadcast %18 : vector<1x256xi1> to vector<4x256xi1>
    %20 = vector.broadcast %cst_8 : f32 to vector<4x256xf32>
    %21 = arith.select %19, %15, %20 : vector<4x256xi1>, vector<4x256xf32>
    %c4 = arith.constant 4 : index
    %c0_9 = arith.constant 0 : index
    %22 = vector.load %arg6[%c4, %c0_9] : memref<36x256xf32, #tpu.memory_space<vmem>>, vector<4x256xf32>
    tpu.vector_store %arg6[%c4, %c0_9], %21 {strides = array<i32>} : memref<36x256xf32, #tpu.memory_space<vmem>>, vector<4x256xf32>,
    %c15_i32 = arith.constant 15 : i32
    %23 = tpu.dynamic_rotate %1 by %c15_i32 dim 1 : vector<4x256xf32>, i32 -> vector<4x256xf32>
    %c16_i32_10 = arith.constant 16 : i32
    %24 = vector.broadcast %c16_i32_10 : i32 to vector<1x256xi32>
    %25 = arith.cmpi sge, %2, %24 : vector<1x256xi32>
    %c14_i32 = arith.constant 14 : i32
    %26 = vector.broadcast %c14_i32 : i32 to vector<1x256xi32>
    %27 = arith.cmpi sle, %3, %26 : vector<1x256xi32>
    %28 = arith.andi %25, %27 : vector<1x256xi1>
    %cst_11 = arith.constant 0.000000e+00 : f32
    %29 = vector.shape_cast %28 : vector<1x256xi1> to vector<1x256xi1>
    %30 = vector.broadcast %29 : vector<1x256xi1> to vector<4x256xi1>
    %31 = vector.broadcast %cst_11 : f32 to vector<4x256xf32>
    %32 = arith.select %30, %23, %31 : vector<4x256xi1>, vector<4x256xf32>
    %c8 = arith.constant 8 : index
    %c0_12 = arith.constant 0 : index
    %33 = vector.load %arg6[%c8, %c0_12] : memref<36x256xf32, #tpu.memory_space<vmem>>, vector<4x256xf32>
    tpu.vector_store %arg6[%c8, %c0_12], %32 {strides = array<i32>} : memref<36x256xf32, #tpu.memory_space<vmem>>, vector<4x256xf32>,
    %c1_i32_13 = arith.constant 1 : i32
    %34 = tpu.dynamic_rotate %1 by %c1_i32_13 dim 1 : vector<4x256xf32>, i32 -> vector<4x256xf32>
    %c1_i32_14 = arith.constant 1 : i32
    %35 = vector.broadcast %c1_i32_14 : i32 to vector<1x256xi32>
    %36 = arith.cmpi sge, %3, %35 : vector<1x256xi32>
    %cst_15 = arith.constant 0.000000e+00 : f32
    %37 = vector.shape_cast %36 : vector<1x256xi1> to vector<1x256xi1>
    %38 = vector.broadcast %37 : vector<1x256xi1> to vector<4x256xi1>
    %39 = vector.broadcast %cst_15 : f32 to vector<4x256xf32>
    %40 = arith.select %38, %34, %39 : vector<4x256xi1>, vector<4x256xf32>
    %c12 = arith.constant 12 : index
    %c0_16 = arith.constant 0 : index
    %41 = vector.load %arg6[%c12, %c0_16] : memref<36x256xf32, #tpu.memory_space<vmem>>, vector<4x256xf32>
    tpu.vector_store %arg6[%c12, %c0_16], %40 {strides = array<i32>} : memref<36x256xf32, #tpu.memory_space<vmem>>, vector<4x256xf32>,
    %c16 = arith.constant 16 : index
    %c0_17 = arith.constant 0 : index
    %42 = vector.load %arg6[%c16, %c0_17] : memref<36x256xf32, #tpu.memory_space<vmem>>, vector<4x256xf32>
    tpu.vector_store %arg6[%c16, %c0_17], %1 {strides = array<i32>} : memref<36x256xf32, #tpu.memory_space<vmem>>, vector<4x256xf32>,
    %c255_i32 = arith.constant 255 : i32
    %43 = tpu.dynamic_rotate %1 by %c255_i32 dim 1 : vector<4x256xf32>, i32 -> vector<4x256xf32>
    %c14_i32_18 = arith.constant 14 : i32
    %44 = vector.broadcast %c14_i32_18 : i32 to vector<1x256xi32>
    %45 = arith.cmpi sle, %3, %44 : vector<1x256xi32>
    %cst_19 = arith.constant 0.000000e+00 : f32
    %46 = vector.shape_cast %45 : vector<1x256xi1> to vector<1x256xi1>
    %47 = vector.broadcast %46 : vector<1x256xi1> to vector<4x256xi1>
    %48 = vector.broadcast %cst_19 : f32 to vector<4x256xf32>
    %49 = arith.select %47, %43, %48 : vector<4x256xi1>, vector<4x256xf32>
    %c20 = arith.constant 20 : index
    %c0_20 = arith.constant 0 : index
    %50 = vector.load %arg6[%c20, %c0_20] : memref<36x256xf32, #tpu.memory_space<vmem>>, vector<4x256xf32>
    tpu.vector_store %arg6[%c20, %c0_20], %49 {strides = array<i32>} : memref<36x256xf32, #tpu.memory_space<vmem>>, vector<4x256xf32>,
    %c241_i32 = arith.constant 241 : i32
    %51 = tpu.dynamic_rotate %1 by %c241_i32 dim 1 : vector<4x256xf32>, i32 -> vector<4x256xf32>
    %c240_i32 = arith.constant 240 : i32
    %52 = vector.broadcast %c240_i32 : i32 to vector<1x256xi32>
    %53 = arith.cmpi slt, %2, %52 : vector<1x256xi32>
    %c1_i32_21 = arith.constant 1 : i32
    %54 = vector.broadcast %c1_i32_21 : i32 to vector<1x256xi32>
    %55 = arith.cmpi sge, %3, %54 : vector<1x256xi32>
    %56 = arith.andi %53, %55 : vector<1x256xi1>
    %cst_22 = arith.constant 0.000000e+00 : f32
    %57 = vector.shape_cast %56 : vector<1x256xi1> to vector<1x256xi1>
    %58 = vector.broadcast %57 : vector<1x256xi1> to vector<4x256xi1>
    %59 = vector.broadcast %cst_22 : f32 to vector<4x256xf32>
    %60 = arith.select %58, %51, %59 : vector<4x256xi1>, vector<4x256xf32>
    %c24 = arith.constant 24 : index
    %c0_23 = arith.constant 0 : index
    %61 = vector.load %arg6[%c24, %c0_23] : memref<36x256xf32, #tpu.memory_space<vmem>>, vector<4x256xf32>
    tpu.vector_store %arg6[%c24, %c0_23], %60 {strides = array<i32>} : memref<36x256xf32, #tpu.memory_space<vmem>>, vector<4x256xf32>,
    %c240_i32_24 = arith.constant 240 : i32
    %62 = tpu.dynamic_rotate %1 by %c240_i32_24 dim 1 : vector<4x256xf32>, i32 -> vector<4x256xf32>
    %c240_i32_25 = arith.constant 240 : i32
    %63 = vector.broadcast %c240_i32_25 : i32 to vector<1x256xi32>
    %64 = arith.cmpi slt, %2, %63 : vector<1x256xi32>
    %cst_26 = arith.constant 0.000000e+00 : f32
    %65 = vector.shape_cast %64 : vector<1x256xi1> to vector<1x256xi1>
    %66 = vector.broadcast %65 : vector<1x256xi1> to vector<4x256xi1>
    %67 = vector.broadcast %cst_26 : f32 to vector<4x256xf32>
    %68 = arith.select %66, %62, %67 : vector<4x256xi1>, vector<4x256xf32>
    %c28 = arith.constant 28 : index
    %c0_27 = arith.constant 0 : index
    %69 = vector.load %arg6[%c28, %c0_27] : memref<36x256xf32, #tpu.memory_space<vmem>>, vector<4x256xf32>
    tpu.vector_store %arg6[%c28, %c0_27], %68 {strides = array<i32>} : memref<36x256xf32, #tpu.memory_space<vmem>>, vector<4x256xf32>,
    %c239_i32 = arith.constant 239 : i32
    %70 = tpu.dynamic_rotate %1 by %c239_i32 dim 1 : vector<4x256xf32>, i32 -> vector<4x256xf32>
    %c240_i32_28 = arith.constant 240 : i32
    %71 = vector.broadcast %c240_i32_28 : i32 to vector<1x256xi32>
    %72 = arith.cmpi slt, %2, %71 : vector<1x256xi32>
    %c14_i32_29 = arith.constant 14 : i32
    %73 = vector.broadcast %c14_i32_29 : i32 to vector<1x256xi32>
    %74 = arith.cmpi sle, %3, %73 : vector<1x256xi32>
    %75 = arith.andi %72, %74 : vector<1x256xi1>
    %cst_30 = arith.constant 0.000000e+00 : f32
    %76 = vector.shape_cast %75 : vector<1x256xi1> to vector<1x256xi1>
    %77 = vector.broadcast %76 : vector<1x256xi1> to vector<4x256xi1>
    %78 = vector.broadcast %cst_30 : f32 to vector<4x256xf32>
    %79 = arith.select %77, %70, %78 : vector<4x256xi1>, vector<4x256xf32>
    %c32 = arith.constant 32 : index
    %c0_31 = arith.constant 0 : index
    %80 = vector.load %arg6[%c32, %c0_31] : memref<36x256xf32, #tpu.memory_space<vmem>>, vector<4x256xf32>
    tpu.vector_store %arg6[%c32, %c0_31], %79 {strides = array<i32>} : memref<36x256xf32, #tpu.memory_space<vmem>>, vector<4x256xf32>,
    %c0_32 = arith.constant 0 : index
    %c0_33 = arith.constant 0 : index
    %81 = vector.load %arg2[%c0_32, %c0_33] : memref<4x36xf32, #tpu.memory_space<vmem>>, vector<4x36xf32>
    %c0_34 = arith.constant 0 : index
    %c0_35 = arith.constant 0 : index
    %82 = vector.load %arg6[%c0_34, %c0_35] : memref<36x256xf32, #tpu.memory_space<vmem>>, vector<36x256xf32>
    %cst_36 = arith.constant dense<0.000000e+00> : vector<4x256xf32>
    %83 = tpu.matmul %81, %82, %cst_36 {dimension_numbers = #tpu.dot_dimension_numbers<[1], [0], [0], [1], [0, 0, 1, 1], [], []>} : vector<4x36xf32>, vector<36x256xf32>, vector<4x256xf32> -> vector<4x256xf32>
    %cst_37 = arith.constant 0.000000e+00 : f32
    %84 = vector.broadcast %cst_37 : f32 to vector<4x256xf32>
    %85 = arith.maximumf %83, %84 : vector<4x256xf32>
    %c17_i32_38 = arith.constant 17 : i32
    %86 = tpu.dynamic_rotate %85 by %c17_i32_38 dim 1 : vector<4x256xf32>, i32 -> vector<4x256xf32>
    %c16_i32_39 = arith.constant 16 : i32
    %87 = vector.broadcast %c16_i32_39 : i32 to vector<1x256xi32>
    %88 = arith.cmpi sge, %2, %87 : vector<1x256xi32>
    %c1_i32_40 = arith.constant 1 : i32
    %89 = vector.broadcast %c1_i32_40 : i32 to vector<1x256xi32>
    %90 = arith.cmpi sge, %3, %89 : vector<1x256xi32>
    %91 = arith.andi %88, %90 : vector<1x256xi1>
    %cst_41 = arith.constant 0.000000e+00 : f32
    %92 = vector.shape_cast %91 : vector<1x256xi1> to vector<1x256xi1>
    %93 = vector.broadcast %92 : vector<1x256xi1> to vector<4x256xi1>
    %94 = vector.broadcast %cst_41 : f32 to vector<4x256xf32>
    %95 = arith.select %93, %86, %94 : vector<4x256xi1>, vector<4x256xf32>
    %c0_42 = arith.constant 0 : index
    %c0_43 = arith.constant 0 : index
    %96 = vector.load %arg6[%c0_42, %c0_43] : memref<36x256xf32, #tpu.memory_space<vmem>>, vector<4x256xf32>
    tpu.vector_store %arg6[%c0_42, %c0_43], %95 {strides = array<i32>} : memref<36x256xf32, #tpu.memory_space<vmem>>, vector<4x256xf32>,
    %c16_i32_44 = arith.constant 16 : i32
    %97 = tpu.dynamic_rotate %85 by %c16_i32_44 dim 1 : vector<4x256xf32>, i32 -> vector<4x256xf32>
    %c16_i32_45 = arith.constant 16 : i32
    %98 = vector.broadcast %c16_i32_45 : i32 to vector<1x256xi32>
    %99 = arith.cmpi sge, %2, %98 : vector<1x256xi32>
    %cst_46 = arith.constant 0.000000e+00 : f32
    %100 = vector.shape_cast %99 : vector<1x256xi1> to vector<1x256xi1>
    %101 = vector.broadcast %100 : vector<1x256xi1> to vector<4x256xi1>
    %102 = vector.broadcast %cst_46 : f32 to vector<4x256xf32>
    %103 = arith.select %101, %97, %102 : vector<4x256xi1>, vector<4x256xf32>
    %c4_47 = arith.constant 4 : index
    %c0_48 = arith.constant 0 : index
    %104 = vector.load %arg6[%c4_47, %c0_48] : memref<36x256xf32, #tpu.memory_space<vmem>>, vector<4x256xf32>
    tpu.vector_store %arg6[%c4_47, %c0_48], %103 {strides = array<i32>} : memref<36x256xf32, #tpu.memory_space<vmem>>, vector<4x256xf32>,
    %c15_i32_49 = arith.constant 15 : i32
    %105 = tpu.dynamic_rotate %85 by %c15_i32_49 dim 1 : vector<4x256xf32>, i32 -> vector<4x256xf32>
    %c16_i32_50 = arith.constant 16 : i32
    %106 = vector.broadcast %c16_i32_50 : i32 to vector<1x256xi32>
    %107 = arith.cmpi sge, %2, %106 : vector<1x256xi32>
    %c14_i32_51 = arith.constant 14 : i32
    %108 = vector.broadcast %c14_i32_51 : i32 to vector<1x256xi32>
    %109 = arith.cmpi sle, %3, %108 : vector<1x256xi32>
    %110 = arith.andi %107, %109 : vector<1x256xi1>
    %cst_52 = arith.constant 0.000000e+00 : f32
    %111 = vector.shape_cast %110 : vector<1x256xi1> to vector<1x256xi1>
    %112 = vector.broadcast %111 : vector<1x256xi1> to vector<4x256xi1>
    %113 = vector.broadcast %cst_52 : f32 to vector<4x256xf32>
    %114 = arith.select %112, %105, %113 : vector<4x256xi1>, vector<4x256xf32>
    %c8_53 = arith.constant 8 : index
    %c0_54 = arith.constant 0 : index
    %115 = vector.load %arg6[%c8_53, %c0_54] : memref<36x256xf32, #tpu.memory_space<vmem>>, vector<4x256xf32>
    tpu.vector_store %arg6[%c8_53, %c0_54], %114 {strides = array<i32>} : memref<36x256xf32, #tpu.memory_space<vmem>>, vector<4x256xf32>,
    %c1_i32_55 = arith.constant 1 : i32
    %116 = tpu.dynamic_rotate %85 by %c1_i32_55 dim 1 : vector<4x256xf32>, i32 -> vector<4x256xf32>
    %c1_i32_56 = arith.constant 1 : i32
    %117 = vector.broadcast %c1_i32_56 : i32 to vector<1x256xi32>
    %118 = arith.cmpi sge, %3, %117 : vector<1x256xi32>
    %cst_57 = arith.constant 0.000000e+00 : f32
    %119 = vector.shape_cast %118 : vector<1x256xi1> to vector<1x256xi1>
    %120 = vector.broadcast %119 : vector<1x256xi1> to vector<4x256xi1>
    %121 = vector.broadcast %cst_57 : f32 to vector<4x256xf32>
    %122 = arith.select %120, %116, %121 : vector<4x256xi1>, vector<4x256xf32>
    %c12_58 = arith.constant 12 : index
    %c0_59 = arith.constant 0 : index
    %123 = vector.load %arg6[%c12_58, %c0_59] : memref<36x256xf32, #tpu.memory_space<vmem>>, vector<4x256xf32>
    tpu.vector_store %arg6[%c12_58, %c0_59], %122 {strides = array<i32>} : memref<36x256xf32, #tpu.memory_space<vmem>>, vector<4x256xf32>,
    %c16_60 = arith.constant 16 : index
    %c0_61 = arith.constant 0 : index
    %124 = vector.load %arg6[%c16_60, %c0_61] : memref<36x256xf32, #tpu.memory_space<vmem>>, vector<4x256xf32>
    tpu.vector_store %arg6[%c16_60, %c0_61], %85 {strides = array<i32>} : memref<36x256xf32, #tpu.memory_space<vmem>>, vector<4x256xf32>,
    %c255_i32_62 = arith.constant 255 : i32
    %125 = tpu.dynamic_rotate %85 by %c255_i32_62 dim 1 : vector<4x256xf32>, i32 -> vector<4x256xf32>
    %c14_i32_63 = arith.constant 14 : i32
    %126 = vector.broadcast %c14_i32_63 : i32 to vector<1x256xi32>
    %127 = arith.cmpi sle, %3, %126 : vector<1x256xi32>
    %cst_64 = arith.constant 0.000000e+00 : f32
    %128 = vector.shape_cast %127 : vector<1x256xi1> to vector<1x256xi1>
    %129 = vector.broadcast %128 : vector<1x256xi1> to vector<4x256xi1>
    %130 = vector.broadcast %cst_64 : f32 to vector<4x256xf32>
    %131 = arith.select %129, %125, %130 : vector<4x256xi1>, vector<4x256xf32>
    %c20_65 = arith.constant 20 : index
    %c0_66 = arith.constant 0 : index
    %132 = vector.load %arg6[%c20_65, %c0_66] : memref<36x256xf32, #tpu.memory_space<vmem>>, vector<4x256xf32>
    tpu.vector_store %arg6[%c20_65, %c0_66], %131 {strides = array<i32>} : memref<36x256xf32, #tpu.memory_space<vmem>>, vector<4x256xf32>,
    %c241_i32_67 = arith.constant 241 : i32
    %133 = tpu.dynamic_rotate %85 by %c241_i32_67 dim 1 : vector<4x256xf32>, i32 -> vector<4x256xf32>
    %c240_i32_68 = arith.constant 240 : i32
    %134 = vector.broadcast %c240_i32_68 : i32 to vector<1x256xi32>
    %135 = arith.cmpi slt, %2, %134 : vector<1x256xi32>
    %c1_i32_69 = arith.constant 1 : i32
    %136 = vector.broadcast %c1_i32_69 : i32 to vector<1x256xi32>
    %137 = arith.cmpi sge, %3, %136 : vector<1x256xi32>
    %138 = arith.andi %135, %137 : vector<1x256xi1>
    %cst_70 = arith.constant 0.000000e+00 : f32
    %139 = vector.shape_cast %138 : vector<1x256xi1> to vector<1x256xi1>
    %140 = vector.broadcast %139 : vector<1x256xi1> to vector<4x256xi1>
    %141 = vector.broadcast %cst_70 : f32 to vector<4x256xf32>
    %142 = arith.select %140, %133, %141 : vector<4x256xi1>, vector<4x256xf32>
    %c24_71 = arith.constant 24 : index
    %c0_72 = arith.constant 0 : index
    %143 = vector.load %arg6[%c24_71, %c0_72] : memref<36x256xf32, #tpu.memory_space<vmem>>, vector<4x256xf32>
    tpu.vector_store %arg6[%c24_71, %c0_72], %142 {strides = array<i32>} : memref<36x256xf32, #tpu.memory_space<vmem>>, vector<4x256xf32>,
    %c240_i32_73 = arith.constant 240 : i32
    %144 = tpu.dynamic_rotate %85 by %c240_i32_73 dim 1 : vector<4x256xf32>, i32 -> vector<4x256xf32>
    %c240_i32_74 = arith.constant 240 : i32
    %145 = vector.broadcast %c240_i32_74 : i32 to vector<1x256xi32>
    %146 = arith.cmpi slt, %2, %145 : vector<1x256xi32>
    %cst_75 = arith.constant 0.000000e+00 : f32
    %147 = vector.shape_cast %146 : vector<1x256xi1> to vector<1x256xi1>
    %148 = vector.broadcast %147 : vector<1x256xi1> to vector<4x256xi1>
    %149 = vector.broadcast %cst_75 : f32 to vector<4x256xf32>
    %150 = arith.select %148, %144, %149 : vector<4x256xi1>, vector<4x256xf32>
    %c28_76 = arith.constant 28 : index
    %c0_77 = arith.constant 0 : index
    %151 = vector.load %arg6[%c28_76, %c0_77] : memref<36x256xf32, #tpu.memory_space<vmem>>, vector<4x256xf32>
    tpu.vector_store %arg6[%c28_76, %c0_77], %150 {strides = array<i32>} : memref<36x256xf32, #tpu.memory_space<vmem>>, vector<4x256xf32>,
    %c239_i32_78 = arith.constant 239 : i32
    %152 = tpu.dynamic_rotate %85 by %c239_i32_78 dim 1 : vector<4x256xf32>, i32 -> vector<4x256xf32>
    %c240_i32_79 = arith.constant 240 : i32
    %153 = vector.broadcast %c240_i32_79 : i32 to vector<1x256xi32>
    %154 = arith.cmpi slt, %2, %153 : vector<1x256xi32>
    %c14_i32_80 = arith.constant 14 : i32
    %155 = vector.broadcast %c14_i32_80 : i32 to vector<1x256xi32>
    %156 = arith.cmpi sle, %3, %155 : vector<1x256xi32>
    %157 = arith.andi %154, %156 : vector<1x256xi1>
    %cst_81 = arith.constant 0.000000e+00 : f32
    %158 = vector.shape_cast %157 : vector<1x256xi1> to vector<1x256xi1>
    %159 = vector.broadcast %158 : vector<1x256xi1> to vector<4x256xi1>
    %160 = vector.broadcast %cst_81 : f32 to vector<4x256xf32>
    %161 = arith.select %159, %152, %160 : vector<4x256xi1>, vector<4x256xf32>
    %c32_82 = arith.constant 32 : index
    %c0_83 = arith.constant 0 : index
    %162 = vector.load %arg6[%c32_82, %c0_83] : memref<36x256xf32, #tpu.memory_space<vmem>>, vector<4x256xf32>
    tpu.vector_store %arg6[%c32_82, %c0_83], %161 {strides = array<i32>} : memref<36x256xf32, #tpu.memory_space<vmem>>, vector<4x256xf32>,
    %c0_84 = arith.constant 0 : index
    %c0_85 = arith.constant 0 : index
    %163 = vector.load %arg3[%c0_84, %c0_85] : memref<4x36xf32, #tpu.memory_space<vmem>>, vector<4x36xf32>
    %c0_86 = arith.constant 0 : index
    %c0_87 = arith.constant 0 : index
    %164 = vector.load %arg6[%c0_86, %c0_87] : memref<36x256xf32, #tpu.memory_space<vmem>>, vector<36x256xf32>
    %cst_88 = arith.constant dense<0.000000e+00> : vector<4x256xf32>
    %165 = tpu.matmul %163, %164, %cst_88 {dimension_numbers = #tpu.dot_dimension_numbers<[1], [0], [0], [1], [0, 0, 1, 1], [], []>} : vector<4x36xf32>, vector<36x256xf32>, vector<4x256xf32> -> vector<4x256xf32>
    %166 = arith.addf %165, %1 : vector<4x256xf32>
    %c0_89 = arith.constant 0 : index
    %c0_90 = arith.constant 0 : index
    %c0_91 = arith.constant 0 : index
    %167 = vector.load %arg5[%c0_89, %c0_90, %c0_91] : memref<1x4x256xf32, #tpu.memory_space<vmem>>, vector<1x4x256xf32>
    %168 = vector.shape_cast %167 : vector<1x4x256xf32> to vector<4x256xf32>
    %169 = vector.shape_cast %166 : vector<4x256xf32> to vector<1x4x256xf32>
    tpu.vector_store %arg5[%c0_89, %c0_90, %c0_91], %169 {strides = array<i32>} : memref<1x4x256xf32, #tpu.memory_space<vmem>>, vector<1x4x256xf32>,
    return
  }
  func.func @transform_0(%arg0: i32) -> (i32, i32, i32) {
    %c0_i32 = arith.constant 0 : i32
    %c0_i32_0 = arith.constant 0 : i32
    %c0_i32_1 = arith.constant 0 : i32
    return %arg0, %c0_i32, %c0_i32_0 : i32, i32, i32
  }
  func.func @transform_1(%arg0: i32) -> (i32, i32) {
    %c0_i32 = arith.constant 0 : i32
    %c0_i32_0 = arith.constant 0 : i32
    %c0_i32_1 = arith.constant 0 : i32
    return %c0_i32, %c0_i32_0 : i32, i32
  }
  func.func @transform_2(%arg0: i32) -> (i32, i32) {
    %c0_i32 = arith.constant 0 : i32
    %c0_i32_0 = arith.constant 0 : i32
    %c0_i32_1 = arith.constant 0 : i32
    return %c0_i32, %c0_i32_0 : i32, i32
  }
  func.func @transform_3(%arg0: i32) -> (i32, i32) {
    %c0_i32 = arith.constant 0 : i32
    %c0_i32_0 = arith.constant 0 : i32
    %c0_i32_1 = arith.constant 0 : i32
    return %c0_i32, %c0_i32_0 : i32, i32
  }
  func.func @transform_4(%arg0: i32) -> (i32, i32, i32) {
    %c0_i32 = arith.constant 0 : i32
    %c0_i32_0 = arith.constant 0 : i32
    %c0_i32_1 = arith.constant 0 : i32
    return %arg0, %c0_i32, %c0_i32_0 : i32, i32, i32
  }
}

</mosaic_0001>

<llo_original>
// kernel: tile.9
$region0: #{tile.9}
  %s0 = inlined_call_operand.vmem [shape: s32[16,16], index: 0, kind: input, shape index: {}]
  %s1 = inlined_call_operand.vmem [shape: s32[1,256], index: 1, kind: output, shape index: {}]
  $region1: #{tile.9} parent=0
    #allocation0 [shape = 'u8[8192]{0}', space=vmem, size = 0x2000, scoped, tag = 'scoped mem for output reshape']
    %s2 = smov 3
    %v3 = vld [vmem:[%s0] ss:$8 sm:%s2]
    %vm4 = vcmask 130048
    %5 = vst.msk [vmem:[#allocation0] ss:$8 sm:$0x3] %vm4, %v3
    %s6 = scalar_lea.vmem %s0, 7
    %s7 = smov 3
    %v8 = vld [vmem:[%s6] ss:$8 sm:%s7]
    %9 = vrot.lane.b32.xlu0 %v8, 112
    %v10 = vpop.permute.xlu0 %9
    %vm11 = vcmask 1048448
    %12 = vst.msk [vmem:[#allocation0] ss:$8 sm:$0x3] %vm11, %v10
    %s13 = scalar_lea.vmem %s0, 6
    %s14 = smov 3
    %v15 = vld [vmem:[%s13] ss:$8 sm:%s14]
    %16 = vrot.lane.b32.xlu0 %v15, 96
    %v17 = vpop.permute.xlu0 %16
    %vm18 = vcmask 917248
    %19 = vst.msk [vmem:[#allocation0] ss:$8 sm:$0x3] %vm18, %v17
    %s20 = scalar_lea.vmem %s0, 5
    %s21 = smov 3
    %v22 = vld [vmem:[%s20] ss:$8 sm:%s21]
    %23 = vrot.lane.b32.xlu0 %v22, 80
    %v24 = vpop.permute.xlu0 %23
    %vm25 = vcmask 786048
    %26 = vst.msk [vmem:[#allocation0] ss:$8 sm:$0x3] %vm25, %v24
    %s27 = scalar_lea.vmem %s0, 4
    %s28 = smov 3
    %v29 = vld [vmem:[%s27] ss:$8 sm:%s28]
    %30 = vrot.lane.b32.xlu0 %v29, 64
    %v31 = vpop.permute.xlu0 %30
    %vm32 = vcmask 654848
    %33 = vst.msk [vmem:[#allocation0] ss:$8 sm:$0x3] %vm32, %v31
    %s34 = scalar_lea.vmem %s0, 3
    %s35 = smov 3
    %v36 = vld [vmem:[%s34] ss:$8 sm:%s35]
    %37 = vrot.lane.b32.xlu0 %v36, 48
    %v38 = vpop.permute.xlu0 %37
    %vm39 = vcmask 523648
    %40 = vst.msk [vmem:[#allocation0] ss:$8 sm:$0x3] %vm39, %v38
    %s41 = scalar_lea.vmem %s0, 2
    %s42 = smov 3
    %v43 = vld [vmem:[%s41] ss:$8 sm:%s42]
    %44 = vrot.lane.b32.xlu0 %v43, 32
    %v45 = vpop.permute.xlu0 %44
    %vm46 = vcmask 392448
    %47 = vst.msk [vmem:[#allocation0] ss:$8 sm:$0x3] %vm46, %v45
    %s48 = scalar_lea.vmem %s0, 1
    %s49 = smov 3
    %v50 = vld [vmem:[%s48] ss:$8 sm:%s49]
    %51 = vrot.lane.b32.xlu0 %v50, 16
    %v52 = vpop.permute.xlu0 %51
    %vm53 = vcmask 261248
    %54 = vst.msk [vmem:[#allocation0] ss:$8 sm:$0x3] %vm53, %v52
    %s56 = ssub.s32 2, 1
    %v57 = vld [vmem:[#allocation0] sm:%s56]
    %s59 = ssub.s32 2, 1
    %60 = vst [vmem:[%s1] sm:%s59] %v57
    %s61 = scalar_lea.vmem [#allocation0], 8
    %v62 = vld [vmem:[%s61] sm:%s56]
    %s64 = ssub.s32 2, 1
    %s65 = scalar_lea.vmem %s1, 1
    %66 = vst [vmem:[%s65] sm:%s64] %v62

// kernel: residual_block.1
$region0: #{residual_block.1}
  #allocation0 [shape = 'u32[]', space=smem, size = 0x4, offset = 0x4, fixed_abs, tag = 'smem constant byte address 0x4 - core index']
  #allocation1 [shape = 'u32[72,128]{1,0:T(1,128)}', space=vmem, size = 0x9000, scoped, tag = 'internal scratch']
  #allocation2 [shape = 'f32[36,256]{1,0:T(8,128)}', space=vmem, size = 0xa000, scoped, tag = 'scratch operand']
  %s0 = inlined_call_operand.vmem [shape: f32[2,4,256], index: 0, kind: input, shape index: {}]
  %s1 = inlined_call_operand.vmem [shape: f32[4,36], index: 1, kind: input, shape index: {}]
  %s2 = inlined_call_operand.vmem [shape: f32[4,36], index: 2, kind: input, shape index: {}]
  %s3 = inlined_call_operand.vmem [shape: s32[1,256], index: 3, kind: input, shape index: {}]
  %s4 = inlined_call_operand.vmem [shape: f32[2,4,256], index: 4, kind: output, shape index: {}]
  %s5 = sld [smem:[#allocation0]]
  $region49: #{residual_block.1} parent=0
    _
  %s7 = ssub.s32 1, %s5
  %s8 = scalar_select 0, %s7, %s5
  loop: start=0, step=1, limit=4
  $region2: #{residual_block.1} parent=0 // loop_pre_header
    _
  $region3: #{residual_block.1} parent=0 // loop_header
    %s10 = sphi 0, %s14
    %p11 = scmp.ge.s32.totalorder %s10, 4
    %s20 = sphi 0, %s22
    %s23 = sphi 0, %s20
    %s24 = sphi 0, %s23
    %s40 = sphi 0, %s24
    %s44 = sphi 0, %s44
    %s46 = sphi 0, %s44
    %s47 = sphi 0, %s46
    %s61 = sphi 0, %s47
    %s65 = sphi 0, %s65
    %s67 = sphi 0, %s65
    %s68 = sphi 0, %s67
    %s82 = sphi 0, %s68
    %s86 = sphi 0, %s86
    %s88 = sphi 0, %s86
    %s89 = sphi 0, %s88
    %s103 = sphi 0, %s89
    %s109 = sphi 0, %s111
    %s112 = sphi 0, %s109
    %s113 = sphi 0, %s112
    %s129 = sphi 0, %s113
  $region4: #{residual_block.1} parent=0 // loop_header_branch
    %13 = sbr.rel (%p11) target = $region8
  $region5: #{residual_block.1} parent=0 // loop_body
    %s15 = ssub.s32 %s10, 1
    %s16 = ssub.s32 %s10, 2
    %s17 = sadd.s32 %s10, 1
    %s18 = ssub.s32 %s10, %s17
    %p19 = scmp.eq.s32.totalorder %s18, 0
    %s21 = sadd.s32 %s20, 1
    %s22 = scalar_select %p19, %s20, %s21
    %p25 = pneg %p19
    %p26 = scmp.eq.s32.totalorder %s10, 1
    %p27 = por %p25, %p26
    %p28 = scmp.ne.s32.totalorder %s20, %s23
    %p29 = scmp.eq.s32.totalorder %s10, 0
    %p30 = por %p28, %p29
    %p31 = scmp.ne.s32.totalorder %s20, %s23
    %p32 = scmp.eq.s32.totalorder %s15, 1
    %p33 = por %p31, %p32
    %p34 = scmp.ne.s32.totalorder %s23, %s24
    %p35 = scmp.eq.s32.totalorder %s15, 0
    %p36 = por %p34, %p35
    %p37 = scmp.ne.s32.totalorder %s23, %s24
    %p38 = scmp.eq.s32.totalorder %s16, 1
    %p39 = por %p37, %p38
    %p41 = scmp.ne.s32.totalorder %s24, %s40
    %p42 = scmp.eq.s32.totalorder %s16, 0
    %p43 = por %p41, %p42
    %s45 = sadd.s32 %s44, 1
    %p48 = scmp.eq.s32.totalorder %s10, 1
    %p49 = scmp.ne.s32.totalorder %s44, %s46
    %p50 = scmp.eq.s32.totalorder %s10, 0
    %p51 = por %p49, %p50
    %p52 = scmp.ne.s32.totalorder %s44, %s46
    %p53 = scmp.eq.s32.totalorder %s15, 1
    %p54 = por %p52, %p53
    %p55 = scmp.ne.s32.totalorder %s46, %s47
    %p56 = scmp.eq.s32.totalorder %s15, 0
    %p57 = por %p55, %p56
    %p58 = scmp.ne.s32.totalorder %s46, %s47
    %p59 = scmp.eq.s32.totalorder %s16, 1
    %p60 = por %p58, %p59
    %p62 = scmp.ne.s32.totalorder %s47, %s61
    %p63 = scmp.eq.s32.totalorder %s16, 0
    %p64 = por %p62, %p63
    %s66 = sadd.s32 %s65, 1
    %p69 = scmp.eq.s32.totalorder %s10, 1
    %p70 = scmp.ne.s32.totalorder %s65, %s67
    %p71 = scmp.eq.s32.totalorder %s10, 0
    %p72 = por %p70, %p71
    %p73 = scmp.ne.s32.totalorder %s65, %s67
    %p74 = scmp.eq.s32.totalorder %s15, 1
    %p75 = por %p73, %p74
    %p76 = scmp.ne.s32.totalorder %s67, %s68
    %p77 = scmp.eq.s32.totalorder %s15, 0
    %p78 = por %p76, %p77
    %p79 = scmp.ne.s32.totalorder %s67, %s68
    %p80 = scmp.eq.s32.totalorder %s16, 1
    %p81 = por %p79, %p80
    %p83 = scmp.ne.s32.totalorder %s68, %s82
    %p84 = scmp.eq.s32.totalorder %s16, 0
    %p85 = por %p83, %p84
    %s87 = sadd.s32 %s86, 1
    %p90 = scmp.eq.s32.totalorder %s10, 1
    %p91 = scmp.ne.s32.totalorder %s86, %s88
    %p92 = scmp.eq.s32.totalorder %s10, 0
    %p93 = por %p91, %p92
    %p94 = scmp.ne.s32.totalorder %s86, %s88
    %p95 = scmp.eq.s32.totalorder %s15, 1
    %p96 = por %p94, %p95
    %p97 = scmp.ne.s32.totalorder %s88, %s89
    %p98 = scmp.eq.s32.totalorder %s15, 0
    %p99 = por %p97, %p98
    %p100 = scmp.ne.s32.totalorder %s88, %s89
    %p101 = scmp.eq.s32.totalorder %s16, 1
    %p102 = por %p100, %p101
    %p104 = scmp.ne.s32.totalorder %s89, %s103
    %p105 = scmp.eq.s32.totalorder %s16, 0
    %p106 = por %p104, %p105
    %s107 = ssub.s32 %s10, %s17
    %p108 = scmp.eq.s32.totalorder %s107, 0
    %s110 = sadd.s32 %s109, 1
    %s111 = scalar_select %p108, %s109, %s110
    %p114 = pneg %p108
    %p115 = scmp.eq.s32.totalorder %s10, 1
    %p116 = por %p114, %p115
    %p117 = scmp.ne.s32.totalorder %s109, %s112
    %p118 = scmp.eq.s32.totalorder %s10, 0
    %p119 = por %p117, %p118
    %p120 = scmp.ne.s32.totalorder %s109, %s112
    %p121 = scmp.eq.s32.totalorder %s15, 1
    %p122 = por %p120, %p121
    %p123 = scmp.ne.s32.totalorder %s112, %s113
    %p124 = scmp.eq.s32.totalorder %s15, 0
    %p125 = por %p123, %p124
    %p126 = scmp.ne.s32.totalorder %s112, %s113
    %p127 = scmp.eq.s32.totalorder %s16, 1
    %p128 = por %p126, %p127
    %p130 = scmp.ne.s32.totalorder %s113, %s129
    %p131 = scmp.eq.s32.totalorder %s16, 0
    %p132 = por %p130, %p131
    %p133 = scmp.le.s32.totalorder 1, %s10
    %p134 = scmp.lt.s32.totalorder %s10, 3
    %p135 = pnand %p133, %p134
    %p136 = pneg %p135
    // Predicated region
    $region9: #{residual_block.1} parent=5 // pred_check
      _
    $region10: #{residual_block.1} parent=5 // pred_check_branch
      %138 = sbr.rel (%p135) target = $region12
    $region11: #{residual_block.1} parent=5 // pred_region
      %s139 = ssub.s32 %s10, 1
      // Predicated region
      $region13: #{residual_block.1} parent=11 // pred_check
        %p140 = pneg %p57
      $region14: #{residual_block.1} parent=11 // pred_check_branch
        %142 = sbr.rel (%p140) target = $region16
      $region15: #{residual_block.1} parent=11 // pred_region
        _
      $region16: #{residual_block.1} parent=11 // pred_fallthru
        _
      // Predicated region
      $region17: #{residual_block.1} parent=11 // pred_check
        %p143 = pneg %p78
      $region18: #{residual_block.1} parent=11 // pred_check_branch
        %145 = sbr.rel (%p143) target = $region20
      $region19: #{residual_block.1} parent=11 // pred_region
        _
      $region20: #{residual_block.1} parent=11 // pred_fallthru
        _
      // Predicated region
      $region21: #{residual_block.1} parent=11 // pred_check
        %p146 = pneg %p99
      $region22: #{residual_block.1} parent=11 // pred_check_branch
        %148 = sbr.rel (%p146) target = $region24
      $region23: #{residual_block.1} parent=11 // pred_region
        _
      $region24: #{residual_block.1} parent=11 // pred_fallthru
        _
    $region12: #{residual_block.1} parent=5 // pred_fallthru
      _
    %p149 = scmp.lt.s32.totalorder %s10, 2
    // Predicated region
    $region25: #{residual_block.1} parent=5 // pred_check
      %p150 = pneg %p149
    $region26: #{residual_block.1} parent=5 // pred_check_branch
      %152 = sbr.rel (%p150) target = $region28
    $region27: #{residual_block.1} parent=5 // pred_region
      // Predicated region
      $region29: #{residual_block.1} parent=27 // pred_check
        %p153 = pneg %p30
      $region30: #{residual_block.1} parent=27 // pred_check_branch
        %155 = sbr.rel (%p153) target = $region32
      $region31: #{residual_block.1} parent=27 // pred_region
        %p156 = scmp.lt.s32.totalorder %s10, 1
        %s157 = scalar_select %p156, %s10, 1
        %s158 = smul.addr %s157, 2
        %s159 = smul.addr %s158, 4
        %s160 = scalar_lea.vmem %s0, %s159
      $region32: #{residual_block.1} parent=27 // pred_fallthru
        _
    $region28: #{residual_block.1} parent=5 // pred_fallthru
      _
    %p161 = scmp.le.s32.totalorder 1, %s10
    %p162 = scmp.lt.s32.totalorder %s10, 3
    %p163 = pnand %p161, %p162
    %p164 = pneg %p163
    // Predicated region
    $region33: #{residual_block.1} parent=5 // pred_check
      _
    $region34: #{residual_block.1} parent=5 // pred_check_branch
      %166 = sbr.rel (%p163) target = $region36
    $region35: #{residual_block.1} parent=5 // pred_region
      %s167 = ssub.s32 %s10, 1
      %p168 = scmp.lt.s32.totalorder %s15, 1
      %s169 = scalar_select %p168, %s15, 1
      %s170 = smul.addr %s169, 2
      %s171 = smul.addr %s170, 4
      %s172 = scalar_lea.vmem %s0, %s171
      %p173 = pneg %p36
      %p174 = pneg %p33
      %p175 = pneg %p57
      %p176 = pneg %p54
      %p177 = pneg %p78
      %p178 = pneg %p75
      %p179 = pneg %p99
      %p180 = pneg %p96
      %p181 = pneg %p125
      %p182 = pneg %p122
      %p183 = scmp.lt.s32.totalorder %s15, 1
      %s184 = scalar_select %p183, %s15, 1
      %s185 = smul.addr %s184, 2
      %s186 = smul.addr %s185, 4
      %s187 = scalar_lea.vmem %s4, %s186
      %p188 = scmp.lt.s32.totalorder %s15, 1
      %s189 = scalar_select %p188, %s15, 1
      %s190 = smul.addr %s189, 2
      %s191 = smul.addr %s190, 4
      %s192 = scalar_lea.vmem %s0, %s191
      %p193 = scmp.lt.s32.totalorder %s15, 1
      %s194 = scalar_select %p193, %s15, 1
      %s195 = smul.addr %s194, 2
      %s196 = smul.addr %s195, 4
      %s197 = scalar_lea.vmem %s4, %s196
      %v198 = vld [vmem:[%s192] sm:$0xff]
      %v199 = vlaneseq
      %v200 = vand.u32 %v199, 127
      %v201 = vadd.s32 %v200, 128
      %v202 = vld [vmem:[%s3] sm:$0x3]
      %204 = vst [vmem:[#allocation1] ss:$2 sm:$0xff] %v198
      %v205 = vld.sshfl [vmem:[#allocation1] sm:$0xff pattern:$0x75316420]
      %v206 = vld.sshfl [vmem:[#allocation1 + $0x8] sm:$0xff pattern:$0x75316420]
      %209 = vrot.lane.b32.xlu0 %v205, 17
      %v210 = vpop.permute.xlu0 %209
      %211 = vrot.lane.b32.xlu0 %v206, 17
      %v212 = vpop.permute.xlu0 %211
      %vm213 = vcmp.lt.s32.totalorder %v200, 17
      %v214 = vsel %vm213, %v210, %v212
      %v215 = vsel %vm213, %v212, %v210
      %vm216 = vcmp.ge.s32.totalorder %v200, 16
      %vm217 = vcmp.ge.s32.totalorder %v201, 16
      %vm218 = vcmp.ge.s32.totalorder %v202, 1
      %v219 = vsel %vm218, 1, 0
      %v220 = vperm.slane %v219, 0
      %v221 = vperm.slane %v219, 1
      %vm222 = vcmp.ne.s32.totalorder %v220, 0
      %vm223 = vcmp.ne.s32.totalorder %v221, 0
      %vm224 = vmand %vm216, %vm222
      %vm225 = vmand %vm217, %vm223
      %v226 = vsel %vm224, 1, 0
      %v227 = vsel %vm225, 1, 0
      %v228 = vperm.slane %v226, 0
      %v229 = vperm.slane %v227, 0
      %vm230 = vcmp.eq.s32.totalorder %v228, 1
      %vm231 = vcmp.eq.s32.totalorder %v229, 1
      %v232 = vsel %vm230, %v215, 0.0
      %v233 = vsel %vm231, %v214, 0.0
      %234 = vst [vmem:[#allocation2] sm:$0xf] %v232
      %235 = vst [vmem:[#allocation2 + $0x8] sm:$0xf] %v233
      %236 = vst [vmem:[#allocation1] ss:$2 sm:$0xff] %v198
      %v237 = vld.sshfl [vmem:[#allocation1] sm:$0xff pattern:$0x75316420]
      %v238 = vld.sshfl [vmem:[#allocation1 + $0x8] sm:$0xff pattern:$0x75316420]
      %241 = vrot.lane.b32.xlu0 %v237, 16
      %v242 = vpop.permute.xlu0 %241
      %243 = vrot.lane.b32.xlu0 %v238, 16
      %v244 = vpop.permute.xlu0 %243
      %vm245 = vcmp.lt.s32.totalorder %v200, 16
      %v246 = vsel %vm245, %v242, %v244
      %v247 = vsel %vm245, %v244, %v242
      %v248 = vsel %vm216, 1, 0
      %v249 = vsel %vm217, 1, 0
      %vm250 = vcmp.eq.s32.totalorder %v248, 1
      %vm251 = vcmp.eq.s32.totalorder %v249, 1
      %v252 = vsel %vm250, %v247, 0.0
      %v253 = vsel %vm251, %v246, 0.0
      %v256 = vrot.slane %v252, 4
      %v257 = vrot.slane %v253, 4
      %260 = vst [vmem:[#allocation2] sm:$0xf0] %v256
      %261 = vst [vmem:[#allocation2 + $0x8] sm:$0xf0] %v257
      %262 = vst [vmem:[#allocation1] ss:$2 sm:$0xff] %v198
      %v263 = vld.sshfl [vmem:[#allocation1] sm:$0xff pattern:$0x75316420]
      %v264 = vld.sshfl [vmem:[#allocation1 + $0x8] sm:$0xff pattern:$0x75316420]
      %267 = vrot.lane.b32.xlu0 %v263, 15
      %v268 = vpop.permute.xlu0 %267
      %269 = vrot.lane.b32.xlu0 %v264, 15
      %v270 = vpop.permute.xlu0 %269
      %vm271 = vcmp.lt.s32.totalorder %v200, 15
      %v272 = vsel %vm271, %v268, %v270
      %v273 = vsel %vm271, %v270, %v268
      %vm274 = vcmp.le.s32.totalorder %v202, 14
      %v275 = vsel %vm274, 1, 0
      %v276 = vperm.slane %v275, 0
      %v277 = vperm.slane %v275, 1
      %vm278 = vcmp.ne.s32.totalorder %v276, 0
      %vm279 = vcmp.ne.s32.totalorder %v277, 0
      %vm280 = vmand %vm216, %vm278
      %vm281 = vmand %vm217, %vm279
      %v282 = vsel %vm280, 1, 0
      %v283 = vsel %vm281, 1, 0
      %v284 = vperm.slane %v282, 0
      %v285 = vperm.slane %v283, 0
      %vm286 = vcmp.eq.s32.totalorder %v284, 1
      %vm287 = vcmp.eq.s32.totalorder %v285, 1
      %v288 = vsel %vm286, %v273, 0.0
      %v289 = vsel %vm287, %v272, 0.0
      %290 = vst [vmem:[#allocation2 + $0x10] sm:$0xf] %v288
      %291 = vst [vmem:[#allocation2 + $0x18] sm:$0xf] %v289
      %292 = vst [vmem:[#allocation1] ss:$2 sm:$0xff] %v198
      %v293 = vld.sshfl [vmem:[#allocation1] sm:$0xff pattern:$0x75316420]
      %v294 = vld.sshfl [vmem:[#allocation1 + $0x8] sm:$0xff pattern:$0x75316420]
      %297 = vrot.lane.b32.xlu0 %v293, 1
      %v298 = vpop.permute.xlu0 %297
      %299 = vrot.lane.b32.xlu0 %v294, 1
      %v300 = vpop.permute.xlu0 %299
      %vm301 = vcmp.lt.s32.totalorder %v200, 1
      %v302 = vsel %vm301, %v298, %v300
      %v303 = vsel %vm301, %v300, %v298
      %vm304 = vcmp.eq.s32.totalorder %v220, 1
      %vm305 = vcmp.eq.s32.totalorder %v221, 1
      %v306 = vsel %vm304, %v303, 0.0
      %v307 = vsel %vm305, %v302, 0.0
      %v310 = vrot.slane %v306, 4
      %v311 = vrot.slane %v307, 4
      %314 = vst [vmem:[#allocation2 + $0x10] sm:$0xf0] %v310
      %315 = vst [vmem:[#allocation2 + $0x18] sm:$0xf0] %v311
      %316 = vst [vmem:[#allocation1] ss:$2 sm:$0xff] %v198
      %v317 = vld.sshfl [vmem:[#allocation1] sm:$0xff pattern:$0x75316420]
      %v318 = vld.sshfl [vmem:[#allocation1 + $0x8] sm:$0xff pattern:$0x75316420]
      %321 = vst [vmem:[#allocation2 + $0x20] sm:$0xf] %v317
      %322 = vst [vmem:[#allocation2 + $0x28] sm:$0xf] %v318
      %323 = vst [vmem:[#allocation1] ss:$2 sm:$0xff] %v198
      %v324 = vld.sshfl [vmem:[#allocation1] sm:$0xff pattern:$0x75316420]
      %v325 = vld.sshfl [vmem:[#allocation1 + $0x8] sm:$0xff pattern:$0x75316420]
      %328 = vrot.lane.b32.xlu0 %v324, 127
      %v329 = vpop.permute.xlu0 %328
      %330 = vrot.lane.b32.xlu0 %v325, 127
      %v331 = vpop.permute.xlu0 %330
      %vm332 = vcmp.lt.s32.totalorder %v200, 127
      %v333 = vsel %vm332, %v329, %v331
      %v334 = vsel %vm332, %v331, %v329
      %vm335 = vcmp.eq.s32.totalorder %v276, 1
      %vm336 = vcmp.eq.s32.totalorder %v277, 1
      %v337 = vsel %vm335, %v333, 0.0
      %v338 = vsel %vm336, %v334, 0.0
      %v341 = vrot.slane %v337, 4
      %v342 = vrot.slane %v338, 4
      %345 = vst [vmem:[#allocation2 + $0x20] sm:$0xf0] %v341
      %346 = vst [vmem:[#allocation2 + $0x28] sm:$0xf0] %v342
      %347 = vst [vmem:[#allocation1] ss:$2 sm:$0xff] %v198
      %v348 = vld.sshfl [vmem:[#allocation1] sm:$0xff pattern:$0x75316420]
      %v349 = vld.sshfl [vmem:[#allocation1 + $0x8] sm:$0xff pattern:$0x75316420]
      %352 = vrot.lane.b32.xlu0 %v348, 113
      %v353 = vpop.permute.xlu0 %352
      %354 = vrot.lane.b32.xlu0 %v349, 113
      %v355 = vpop.permute.xlu0 %354
      %vm356 = vcmp.lt.s32.totalorder %v200, 113
      %v357 = vsel %vm356, %v353, %v355
      %v358 = vsel %vm356, %v355, %v353
      %vm359 = vcmp.lt.s32.totalorder %v200, 240
      %vm360 = vcmp.lt.s32.totalorder %v201, 240
      %vm361 = vmand %vm359, %vm222
      %vm362 = vmand %vm360, %vm223
      %v363 = vsel %vm361, 1, 0
      %v364 = vsel %vm362, 1, 0
      %v365 = vperm.slane %v363, 0
      %v366 = vperm.slane %v364, 0
      %vm367 = vcmp.eq.s32.totalorder %v365, 1
      %vm368 = vcmp.eq.s32.totalorder %v366, 1
      %v369 = vsel %vm367, %v357, 0.0
      %v370 = vsel %vm368, %v358, 0.0
      %371 = vst [vmem:[#allocation2 + $0x30] sm:$0xf] %v369
      %372 = vst [vmem:[#allocation2 + $0x38] sm:$0xf] %v370
      %373 = vst [vmem:[#allocation1] ss:$2 sm:$0xff] %v198
      %v374 = vld.sshfl [vmem:[#allocation1] sm:$0xff pattern:$0x75316420]
      %v375 = vld.sshfl [vmem:[#allocation1 + $0x8] sm:$0xff pattern:$0x75316420]
      %378 = vrot.lane.b32.xlu0 %v374, 112
      %v379 = vpop.permute.xlu0 %378
      %380 = vrot.lane.b32.xlu0 %v375, 112
      %v381 = vpop.permute.xlu0 %380
      %vm382 = vcmp.lt.s32.totalorder %v200, 112
      %v383 = vsel %vm382, %v379, %v381
      %v384 = vsel %vm382, %v381, %v379
      %v385 = vsel %vm359, 1, 0
      %v386 = vsel %vm360, 1, 0
      %vm387 = vcmp.eq.s32.totalorder %v385, 1
      %vm388 = vcmp.eq.s32.totalorder %v386, 1
      %v389 = vsel %vm387, %v383, 0.0
      %v390 = vsel %vm388, %v384, 0.0
      %v393 = vrot.slane %v389, 4
      %v394 = vrot.slane %v390, 4
      %397 = vst [vmem:[#allocation2 + $0x30] sm:$0xf0] %v393
      %398 = vst [vmem:[#allocation2 + $0x38] sm:$0xf0] %v394
      %399 = vst [vmem:[#allocation1] ss:$2 sm:$0xff] %v198
      %v400 = vld.sshfl [vmem:[#allocation1] sm:$0xff pattern:$0x75316420]
      %v401 = vld.sshfl [vmem:[#allocation1 + $0x8] sm:$0xff pattern:$0x75316420]
      %404 = vrot.lane.b32.xlu0 %v400, 111
      %v405 = vpop.permute.xlu0 %404
      %406 = vrot.lane.b32.xlu0 %v401, 111
      %v407 = vpop.permute.xlu0 %406
      %vm408 = vcmp.lt.s32.totalorder %v200, 111
      %v409 = vsel %vm408, %v405, %v407
      %v410 = vsel %vm408, %v407, %v405
      %vm411 = vmand %vm359, %vm278
      %vm412 = vmand %vm360, %vm279
      %v413 = vsel %vm411, 1, 0
      %v414 = vsel %vm412, 1, 0
      %v415 = vperm.slane %v413, 0
      %v416 = vperm.slane %v414, 0
      %vm417 = vcmp.eq.s32.totalorder %v415, 1
      %vm418 = vcmp.eq.s32.totalorder %v416, 1
      %v419 = vsel %vm417, %v409, 0.0
      %v420 = vsel %vm418, %v410, 0.0
      %421 = vst [vmem:[#allocation2 + $0x40] sm:$0xf] %v419
      %422 = vst [vmem:[#allocation2 + $0x48] sm:$0xf] %v420
      %v423 = vld [vmem:[%s1] sm:$0xf]
      %v424 = vld [vmem:[#allocation2] sm:$0xff]
      %v425 = vld [vmem:[#allocation2 + $0x8] sm:$0xff]
      %v426 = vld [vmem:[#allocation2 + $0x10] sm:$0xff]
      %v427 = vld [vmem:[#allocation2 + $0x18] sm:$0xff]
      %v428 = vld [vmem:[#allocation2 + $0x20] sm:$0xff]
      %v429 = vld [vmem:[#allocation2 + $0x28] sm:$0xff]
      %v430 = vld [vmem:[#allocation2 + $0x30] sm:$0xff]
      %v431 = vld [vmem:[#allocation2 + $0x38] sm:$0xff]
      %v432 = vld [vmem:[#allocation2 + $0x40] sm:$0xf]
      %v433 = vld [vmem:[#allocation2 + $0x48] sm:$0xf]
      %vm434 = vcmask 293888
      %v436 = vsel %vm434, %v423, 0
      %vm438 = vcmask 1043456
      %v440 = vsel %vm438, %v432, 0
      %v443 = vsel %vm438, %v433, 0
      %445 = vmatpush.msra.mxu0 0.0
      %446 = vmatpush.msra.mxu0 0.0
      %447 = vmatpush.msra.mxu0 0.0
      %448 = vmatpush.msra.mxu0 0.0
      %449 = vmatpush.msra.mxu0 0.0
      %450 = vmatpush.msra.mxu0 0.0
      %451 = vmatpush.msra.mxu0 0.0
      %452 = vmatpush.msra.mxu0 0.0
      %453 = vmatpush.msra.mxu0 0.0
      %454 = vmatpush.msra.mxu0 0.0
      %455 = vmatpush.msra.mxu0 0.0
      %456 = vmatpush.msra.mxu0 %v440
      %457 = vmatpush.msra.mxu0 %v430
      %458 = vmatpush.msra.mxu0 %v428
      %459 = vmatpush.msra.mxu0 %v426
      %460 = vmatpush.msra.mxu0 %v424
      %461 = vmatmul.f32.gmra.mxu0 %v436
      %v462 = vpop.f32.mrf.mxu0
      %v463 = vadd.f32 0.0, %v462
      %464 = vdwg.mxu0
      %465 = vmatpush.msra.mxu0 0.0
      %466 = vmatpush.msra.mxu0 0.0
      %467 = vmatpush.msra.mxu0 0.0
      %468 = vmatpush.msra.mxu0 0.0
      %469 = vmatpush.msra.mxu0 0.0
      %470 = vmatpush.msra.mxu0 0.0
      %471 = vmatpush.msra.mxu0 0.0
      %472 = vmatpush.msra.mxu0 0.0
      %473 = vmatpush.msra.mxu0 0.0
      %474 = vmatpush.msra.mxu0 0.0
      %475 = vmatpush.msra.mxu0 0.0
      %476 = vmatpush.msra.mxu0 %v443
      %477 = vmatpush.msra.mxu0 %v431
      %478 = vmatpush.msra.mxu0 %v429
      %479 = vmatpush.msra.mxu0 %v427
      %480 = vmatpush.msra.mxu0 %v425
      %481 = vmatmul.f32.gmra.mxu0 %v436
      %v482 = vpop.f32.mrf.mxu0
      %v483 = vadd.f32 0.0, %v482
      %484 = vdwg.mxu0
      %v485 = vmax.f32 %v463, 0.0
      %v486 = vmax.f32 %v483, 0.0
      %487 = vrot.lane.b32.xlu0 %v485, 17
      %v488 = vpop.permute.xlu0 %487
      %489 = vrot.lane.b32.xlu0 %v486, 17
      %v490 = vpop.permute.xlu0 %489
      %v491 = vsel %vm213, %v488, %v490
      %v492 = vsel %vm213, %v490, %v488
      %v493 = vsel %vm230, %v492, 0.0
      %v494 = vsel %vm231, %v491, 0.0
      %495 = vst [vmem:[#allocation2] sm:$0xf] %v493
      %496 = vst [vmem:[#allocation2 + $0x8] sm:$0xf] %v494
      %497 = vrot.lane.b32.xlu0 %v485, 16
      %v498 = vpop.permute.xlu0 %497
      %499 = vrot.lane.b32.xlu0 %v486, 16
      %v500 = vpop.permute.xlu0 %499
      %v501 = vsel %vm245, %v498, %v500
      %v502 = vsel %vm245, %v500, %v498
      %v503 = vsel %vm250, %v502, 0.0
      %v504 = vsel %vm251, %v501, 0.0
      %v507 = vrot.slane %v503, 4
      %v508 = vrot.slane %v504, 4
      %511 = vst [vmem:[#allocation2] sm:$0xf0] %v507
      %512 = vst [vmem:[#allocation2 + $0x8] sm:$0xf0] %v508
      %513 = vrot.lane.b32.xlu0 %v485, 15
      %v514 = vpop.permute.xlu0 %513
      %515 = vrot.lane.b32.xlu0 %v486, 15
      %v516 = vpop.permute.xlu0 %515
      %v517 = vsel %vm271, %v514, %v516
      %v518 = vsel %vm271, %v516, %v514
      %v519 = vsel %vm286, %v518, 0.0
      %v520 = vsel %vm287, %v517, 0.0
      %521 = vst [vmem:[#allocation2 + $0x10] sm:$0xf] %v519
      %522 = vst [vmem:[#allocation2 + $0x18] sm:$0xf] %v520
      %523 = vrot.lane.b32.xlu0 %v485, 1
      %v524 = vpop.permute.xlu0 %523
      %525 = vrot.lane.b32.xlu0 %v486, 1
      %v526 = vpop.permute.xlu0 %525
      %v527 = vsel %vm301, %v524, %v526
      %v528 = vsel %vm301, %v526, %v524
      %v529 = vsel %vm304, %v528, 0.0
      %v530 = vsel %vm305, %v527, 0.0
      %v533 = vrot.slane %v529, 4
      %v534 = vrot.slane %v530, 4
      %537 = vst [vmem:[#allocation2 + $0x10] sm:$0xf0] %v533
      %538 = vst [vmem:[#allocation2 + $0x18] sm:$0xf0] %v534
      %539 = vst [vmem:[#allocation2 + $0x20] sm:$0xf] %v485
      %540 = vst [vmem:[#allocation2 + $0x28] sm:$0xf] %v486
      %541 = vrot.lane.b32.xlu0 %v485, 127
      %v542 = vpop.permute.xlu0 %541
      %543 = vrot.lane.b32.xlu0 %v486, 127
      %v544 = vpop.permute.xlu0 %543
      %v545 = vsel %vm332, %v542, %v544
      %v546 = vsel %vm332, %v544, %v542
      %v547 = vsel %vm335, %v545, 0.0
      %v548 = vsel %vm336, %v546, 0.0
      %v551 = vrot.slane %v547, 4
      %v552 = vrot.slane %v548, 4
      %555 = vst [vmem:[#allocation2 + $0x20] sm:$0xf0] %v551
      %556 = vst [vmem:[#allocation2 + $0x28] sm:$0xf0] %v552
      %557 = vrot.lane.b32.xlu0 %v485, 113
      %v558 = vpop.permute.xlu0 %557
      %559 = vrot.lane.b32.xlu0 %v486, 113
      %v560 = vpop.permute.xlu0 %559
      %v561 = vsel %vm356, %v558, %v560
      %v562 = vsel %vm356, %v560, %v558
      %v563 = vsel %vm367, %v561, 0.0
      %v564 = vsel %vm368, %v562, 0.0
      %565 = vst [vmem:[#allocation2 + $0x30] sm:$0xf] %v563
      %566 = vst [vmem:[#allocation2 + $0x38] sm:$0xf] %v564
      %567 = vrot.lane.b32.xlu0 %v485, 112
      %v568 = vpop.permute.xlu0 %567
      %569 = vrot.lane.b32.xlu0 %v486, 112
      %v570 = vpop.permute.xlu0 %569
      %v571 = vsel %vm382, %v568, %v570
      %v572 = vsel %vm382, %v570, %v568
      %v573 = vsel %vm387, %v571, 0.0
      %v574 = vsel %vm388, %v572, 0.0
      %v577 = vrot.slane %v573, 4
      %v578 = vrot.slane %v574, 4
      %581 = vst [vmem:[#allocation2 + $0x30] sm:$0xf0] %v577
      %582 = vst [vmem:[#allocation2 + $0x38] sm:$0xf0] %v578
      %583 = vrot.lane.b32.xlu0 %v485, 111
      %v584 = vpop.permute.xlu0 %583
      %585 = vrot.lane.b32.xlu0 %v486, 111
      %v586 = vpop.permute.xlu0 %585
      %v587 = vsel %vm408, %v584, %v586
      %v588 = vsel %vm408, %v586, %v584
      %v589 = vsel %vm417, %v587, 0.0
      %v590 = vsel %vm418, %v588, 0.0
      %591 = vst [vmem:[#allocation2 + $0x40] sm:$0xf] %v589
      %592 = vst [vmem:[#allocation2 + $0x48] sm:$0xf] %v590
      %v593 = vld [vmem:[%s2] sm:$0xf]
      %v594 = vld [vmem:[#allocation2] sm:$0xff]
      %v595 = vld [vmem:[#allocation2 + $0x8] sm:$0xff]
      %v596 = vld [vmem:[#allocation2 + $0x10] sm:$0xff]
      %v597 = vld [vmem:[#allocation2 + $0x18] sm:$0xff]
      %v598 = vld [vmem:[#allocation2 + $0x20] sm:$0xff]
      %v599 = vld [vmem:[#allocation2 + $0x28] sm:$0xff]
      %v600 = vld [vmem:[#allocation2 + $0x30] sm:$0xff]
      %v601 = vld [vmem:[#allocation2 + $0x38] sm:$0xff]
      %v602 = vld [vmem:[#allocation2 + $0x40] sm:$0xf]
      %v603 = vld [vmem:[#allocation2 + $0x48] sm:$0xf]
      %604 = vst [vmem:[#allocation1] ss:$2 sm:$0xff] %v198
      %v605 = vld.sshfl [vmem:[#allocation1] sm:$0xff pattern:$0x75316420]
      %v606 = vld.sshfl [vmem:[#allocation1 + $0x8] sm:$0xff pattern:$0x75316420]
      %v610 = vsel %vm434, %v593, 0
      %v613 = vsel %vm438, %v602, 0
      %v616 = vsel %vm438, %v603, 0
      %618 = vmatpush.msra.mxu0 0.0
      %619 = vmatpush.msra.mxu0 0.0
      %620 = vmatpush.msra.mxu0 0.0
      %621 = vmatpush.msra.mxu0 0.0
      %622 = vmatpush.msra.mxu0 0.0
      %623 = vmatpush.msra.mxu0 0.0
      %624 = vmatpush.msra.mxu0 0.0
      %625 = vmatpush.msra.mxu0 0.0
      %626 = vmatpush.msra.mxu0 0.0
      %627 = vmatpush.msra.mxu0 0.0
      %628 = vmatpush.msra.mxu0 0.0
      %629 = vmatpush.msra.mxu0 %v613
      %630 = vmatpush.msra.mxu0 %v600
      %631 = vmatpush.msra.mxu0 %v598
      %632 = vmatpush.msra.mxu0 %v596
      %633 = vmatpush.msra.mxu0 %v594
      %634 = vmatmul.f32.gmra.mxu0 %v610
      %v635 = vpop.f32.mrf.mxu0
      %v636 = vadd.f32 %v605, %v635
      %637 = vdwg.mxu0
      %638 = vmatpush.msra.mxu0 0.0
      %639 = vmatpush.msra.mxu0 0.0
      %640 = vmatpush.msra.mxu0 0.0
      %641 = vmatpush.msra.mxu0 0.0
      %642 = vmatpush.msra.mxu0 0.0
      %643 = vmatpush.msra.mxu0 0.0
      %644 = vmatpush.msra.mxu0 0.0
      %645 = vmatpush.msra.mxu0 0.0
      %646 = vmatpush.msra.mxu0 0.0
      %647 = vmatpush.msra.mxu0 0.0
      %648 = vmatpush.msra.mxu0 0.0
      %649 = vmatpush.msra.mxu0 %v616
      %650 = vmatpush.msra.mxu0 %v601
      %651 = vmatpush.msra.mxu0 %v599
      %652 = vmatpush.msra.mxu0 %v597
      %653 = vmatpush.msra.mxu0 %v595
      %654 = vmatmul.f32.gmra.mxu0 %v610
      %v655 = vpop.f32.mrf.mxu0
      %v656 = vadd.f32 %v606, %v655
      %657 = vdwg.mxu0
      %v660 = vrot.slane %v656, 4
      %v661 = vsel %vm438, %v636, %v660
      %663 = vst [vmem:[%s197] sm:$0xff] %v661
      %p664 = scmp.lt.s32.totalorder %s15, 1
      %s665 = scalar_select %p664, %s15, 1
      %s666 = smul.addr %s665, 2
      %s667 = smul.addr %s666, 4
      %s668 = scalar_lea.vmem %s4, %s667
      // Predicated region
      $region37: #{residual_block.1} parent=35 // pred_check
        %p669 = pneg %p122
      $region38: #{residual_block.1} parent=35 // pred_check_branch
        %671 = sbr.rel (%p669) target = $region40
      $region39: #{residual_block.1} parent=35 // pred_region
        _
      $region40: #{residual_block.1} parent=35 // pred_fallthru
        _
    $region36: #{residual_block.1} parent=5 // pred_fallthru
      _
    %p672 = scmp.le.s32.totalorder 2, %s10
    // Predicated region
    $region41: #{residual_block.1} parent=5 // pred_check
      %p673 = pneg %p672
    $region42: #{residual_block.1} parent=5 // pred_check_branch
      %675 = sbr.rel (%p673) target = $region44
    $region43: #{residual_block.1} parent=5 // pred_region
      %s676 = ssub.s32 %s10, 2
      // Predicated region
      $region45: #{residual_block.1} parent=43 // pred_check
        %p677 = pneg %p128
      $region46: #{residual_block.1} parent=43 // pred_check_branch
        %679 = sbr.rel (%p677) target = $region48
      $region47: #{residual_block.1} parent=43 // pred_region
        %p680 = scmp.lt.s32.totalorder %s16, 1
        %s681 = scalar_select %p680, %s16, 1
        %s682 = smul.addr %s681, 2
        %s683 = smul.addr %s682, 4
        %s684 = scalar_lea.vmem %s4, %s683
      $region48: #{residual_block.1} parent=43 // pred_fallthru
        _
    $region44: #{residual_block.1} parent=5 // pred_fallthru
      _
  $region6: #{residual_block.1} parent=0 // loop_footer
    %s14 = sadd.s32 1, %s10
  $region7: #{residual_block.1} parent=0 // loop_footer_branch
    %9 = sbr.rel target = $region3
  $region8: #{residual_block.1} parent=0 // loop_exit
    _

</llo_original>
